<compile_context>
chip_gen: v5e
topology: v5e:2x2
jax: 0.10.0
libtpu: 0.0.40
codegen_flags: <defaults>
</compile_context>

<pallas_src>
import functools

import jax
import jax.numpy as jnp
from jax import lax
from jax.experimental import pallas as pl
from jax.experimental.pallas import tpu as pltpu


def _lstm_decoder_kernel(x_ref, w_ih_ref, w_hh_ref, b_ref, w_lin_ref, b_lin_ref,
                         o_ref, *, seq_length, hidden_dim):
    T = seq_length
    H = hidden_dim
    Bt = x_ref.shape[0]

    x = x_ref[...].astype(jnp.float32)          # (Bt, D_in)
    w_ih = w_ih_ref[...].astype(jnp.float32)    # (D_in, 4H)
    w_hh = w_hh_ref[...].astype(jnp.float32)    # (H, 4H)
    b = b_ref[...].astype(jnp.float32)          # (1, 4H)  (= b_ih + b_hh)
    w_lin = w_lin_ref[...].astype(jnp.float32)  # (H, D_out)
    b_lin = b_lin_ref[...].astype(jnp.float32)  # (1, D_out)

    # Input contribution is identical at every timestep (the decoder repeats
    # the latent vector), so compute it once and reuse it inside the loop.
    xg = jnp.dot(x, w_ih, preferred_element_type=jnp.float32) + b  # (Bt, 4H)

    # Zero initial hidden / cell state (PyTorch nn.LSTM default).
    h0 = jnp.zeros((Bt, H), jnp.float32)
    c0 = jnp.zeros((Bt, H), jnp.float32)

    def step(t, carry):
        h, c = carry
        gates = xg + jnp.dot(h, w_hh, preferred_element_type=jnp.float32)  # (Bt,4H)
        # PyTorch gate order: input, forget, cell(g), output.
        i_g = jax.nn.sigmoid(gates[:, 0 * H:1 * H])
        f_g = jax.nn.sigmoid(gates[:, 1 * H:2 * H])
        g_g = jnp.tanh(gates[:, 2 * H:3 * H])
        o_g = jax.nn.sigmoid(gates[:, 3 * H:4 * H])
        c_new = f_g * c + i_g * g_g
        h_new = o_g * jnp.tanh(c_new)
        # Fused output projection for this timestep (Linear(hidden -> D_out)).
        out_t = jnp.dot(h_new, w_lin, preferred_element_type=jnp.float32) + b_lin
        o_ref[t] = out_t.astype(o_ref.dtype)
        return (h_new, c_new)

    # Fully unroll short sequences (LLO scheduler visibility); bound code size
    # for long ones with partial unroll.
    unroll = True if T <= 16 else 8
    lax.fori_loop(0, T, step, (h0, c0), unroll=unroll)


def lstm_decoder(x, params, seq_length):
    """x: (B, D_in). Returns (B, seq_length, D_out), matching LSTMDecoder.forward."""
    B, D_in = x.shape
    H = params["w_hh"].shape[1]
    D_out = params["w_lin"].shape[0]
    T = seq_length

    # Pre-transpose weights once so in-kernel matmuls are plain (M,K)@(K,N).
    w_ih_t = jnp.transpose(params["w_ih"])           # (D_in, 4H)
    w_hh_t = jnp.transpose(params["w_hh"])           # (H, 4H)
    b = (params["b_ih"] + params["b_hh"])[None, :]   # (1, 4H)
    w_lin_t = jnp.transpose(params["w_lin"])         # (H, D_out)
    b_lin = params["b_lin"][None, :]                 # (1, D_out)

    # Small batch -> one grid point (no per-step overhead); large batch ->
    # 256-row tiles (fills 256-wide MXU on v6e/v7x), batch axis parallel.
    b_tile = B if B <= 256 else 256
    grid = (pl.cdiv(B, b_tile),)

    kernel = functools.partial(_lstm_decoder_kernel, seq_length=T, hidden_dim=H)

    out = pl.pallas_call(
        kernel,
        out_shape=jax.ShapeDtypeStruct((T, B, D_out), x.dtype),
        grid_spec=pltpu.PrefetchScalarGridSpec(
            num_scalar_prefetch=0,
            grid=grid,
            in_specs=[
                pl.BlockSpec((b_tile, D_in), lambda i: (i, 0)),
                pl.BlockSpec((D_in, 4 * H), lambda i: (0, 0)),   # resident weights
                pl.BlockSpec((H, 4 * H), lambda i: (0, 0)),
                pl.BlockSpec((1, 4 * H), lambda i: (0, 0)),
                pl.BlockSpec((H, D_out), lambda i: (0, 0)),
                pl.BlockSpec((1, D_out), lambda i: (0, 0)),
            ],
            out_specs=pl.BlockSpec((T, b_tile, D_out), lambda i: (0, i, 0)),
        ),
        compiler_params=pltpu.CompilerParams(
            dimension_semantics=("parallel",),
        ),
    )(x, w_ih_t, w_hh_t, b, w_lin_t, b_lin)

    # (T, B, D_out) -> (B, T, D_out), matching batch_first=True.
    return jnp.transpose(out, (1, 0, 2))


def _reference_lstm_decoder(x, params, seq_length):
    """Pure-JAX reference matching torch nn.LSTM (1 layer) + nn.Linear."""
    w_ih, w_hh = params["w_ih"], params["w_hh"]
    b_ih, b_hh = params["b_ih"], params["b_hh"]
    w_lin, b_lin = params["w_lin"], params["b_lin"]
    B = x.shape[0]
    H = w_hh.shape[1]
    h = jnp.zeros((B, H), jnp.float32)
    c = jnp.zeros((B, H), jnp.float32)
    xg = x @ w_ih.T + b_ih + b_hh
    outs = []
    for _ in range(seq_length):
        gates = xg + h @ w_hh.T
        i_g = jax.nn.sigmoid(gates[:, 0 * H:1 * H])
        f_g = jax.nn.sigmoid(gates[:, 1 * H:2 * H])
        g_g = jnp.tanh(gates[:, 2 * H:3 * H])
        o_g = jax.nn.sigmoid(gates[:, 3 * H:4 * H])
        c = f_g * c + i_g * g_g
        h = o_g * jnp.tanh(c)
        outs.append(h)
    hs = jnp.stack(outs, axis=1)              # (B, T, H)
    return hs @ w_lin.T + b_lin               # (B, T, D_out)


if __name__ == "__main__":
    # Small shapes consistent with the module: batch=2, input_dim=8,
    # hidden_dim=32, output_dim=8, seq_length=8.
    B, D_in, H, D_out, T = 2, 8, 32, 8, 8

    key = jax.random.PRNGKey(0)
    kx, k1, k2, k3, k4, k5, k6 = jax.random.split(key, 7)
    scale = 1.0 / float(H) ** 0.5
    params = {
        "w_ih": jax.random.uniform(k1, (4 * H, D_in), jnp.float32, -scale, scale),
        "w_hh": jax.random.uniform(k2, (4 * H, H), jnp.float32, -scale, scale),
        "b_ih": jax.random.uniform(k3, (4 * H,), jnp.float32, -scale, scale),
        "b_hh": jax.random.uniform(k4, (4 * H,), jnp.float32, -scale, scale),
        "w_lin": jax.random.uniform(k5, (D_out, H), jnp.float32, -scale, scale),
        "b_lin": jax.random.uniform(k6, (D_out,), jnp.float32, -scale, scale),
    }
    x = jax.random.normal(kx, (B, D_in), dtype=jnp.float32)

    y = lstm_decoder(x, params, seq_length=T)
    y = jax.block_until_ready(y)

    y_ref = _reference_lstm_decoder(x, params, seq_length=T)
    assert y.shape == (B, T, D_out) and y.dtype == x.dtype
    assert jnp.allclose(y, y_ref, atol=1e-4, rtol=1e-4)

    print("KERNEL_OK")
</pallas_src>

<mosaic_0001>
module attributes {stable_mosaic.version = 11 : i64} {
  func.func @_lstm_decoder_kernel(%arg0: i32, %arg1: memref<2x8xf32, #tpu.memory_space<vmem>>, %arg2: memref<8x128xf32, #tpu.memory_space<vmem>>, %arg3: memref<32x128xf32, #tpu.memory_space<vmem>>, %arg4: memref<1x128xf32, #tpu.memory_space<vmem>>, %arg5: memref<32x8xf32, #tpu.memory_space<vmem>>, %arg6: memref<1x8xf32, #tpu.memory_space<vmem>>, %arg7: memref<8x2x8xf32, #tpu.memory_space<vmem>>) attributes {dimension_semantics = [#tpu.dimension_semantics<parallel>], iteration_bounds = array<i64: 1>, scalar_prefetch = 0 : i64, scratch_operands = 0 : i64, tpu.core_type = #tpu.core_type<tc>, window_params = [{transform_indices = @transform_0, window_bounds = array<i64: 2, 8>}, {pipeline_mode = #tpu.pipeline_mode<synchronous>, transform_indices = @transform_1, window_bounds = array<i64: 8, 128>}, {pipeline_mode = #tpu.pipeline_mode<synchronous>, transform_indices = @transform_2, window_bounds = array<i64: 32, 128>}, {pipeline_mode = #tpu.pipeline_mode<synchronous>, transform_indices = @transform_3, window_bounds = array<i64: 1, 128>}, {pipeline_mode = #tpu.pipeline_mode<synchronous>, transform_indices = @transform_4, window_bounds = array<i64: 32, 8>}, {pipeline_mode = #tpu.pipeline_mode<synchronous>, transform_indices = @transform_5, window_bounds = array<i64: 1, 8>}, {transform_indices = @transform_6, window_bounds = array<i64: 8, 2, 8>}]} {
    %c0 = arith.constant 0 : index
    %c0_0 = arith.constant 0 : index
    %0 = vector.load %arg1[%c0, %c0_0] : memref<2x8xf32, #tpu.memory_space<vmem>>, vector<2x8xf32>
    %c0_1 = arith.constant 0 : index
    %c0_2 = arith.constant 0 : index
    %1 = vector.load %arg2[%c0_1, %c0_2] : memref<8x128xf32, #tpu.memory_space<vmem>>, vector<8x128xf32>
    %c0_3 = arith.constant 0 : index
    %c0_4 = arith.constant 0 : index
    %2 = vector.load %arg3[%c0_3, %c0_4] : memref<32x128xf32, #tpu.memory_space<vmem>>, vector<32x128xf32>
    %c0_5 = arith.constant 0 : index
    %c0_6 = arith.constant 0 : index
    %3 = vector.load %arg4[%c0_5, %c0_6] : memref<1x128xf32, #tpu.memory_space<vmem>>, vector<1x128xf32>
    %c0_7 = arith.constant 0 : index
    %c0_8 = arith.constant 0 : index
    %4 = vector.load %arg5[%c0_7, %c0_8] : memref<32x8xf32, #tpu.memory_space<vmem>>, vector<32x8xf32>
    %c0_9 = arith.constant 0 : index
    %c0_10 = arith.constant 0 : index
    %5 = vector.load %arg6[%c0_9, %c0_10] : memref<1x8xf32, #tpu.memory_space<vmem>>, vector<1x8xf32>
    %cst = arith.constant dense<0.000000e+00> : vector<2x128xf32>
    %6 = tpu.matmul %0, %1, %cst {dimension_numbers = #tpu.dot_dimension_numbers<[1], [0], [0], [1], [0, 0, 1, 1], [], []>} : vector<2x8xf32>, vector<8x128xf32>, vector<2x128xf32> -> vector<2x128xf32>
    %7 = vector.broadcast %3 : vector<1x128xf32> to vector<2x128xf32>
    %8 = arith.addf %6, %7 : vector<2x128xf32>
    %cst_11 = arith.constant 0.000000e+00 : f32
    %9 = vector.broadcast %cst_11 : f32 to vector<2x32xf32>
    %cst_12 = arith.constant 0.000000e+00 : f32
    %10 = vector.broadcast %cst_12 : f32 to vector<2x32xf32>
    %c0_i32 = arith.constant 0 : i32
    %cst_13 = arith.constant dense<0.000000e+00> : vector<2x128xf32>
    %11 = tpu.matmul %9, %2, %cst_13 {dimension_numbers = #tpu.dot_dimension_numbers<[1], [0], [0], [1], [0, 0, 1, 1], [], []>} : vector<2x32xf32>, vector<32x128xf32>, vector<2x128xf32> -> vector<2x128xf32>
    %12 = arith.addf %8, %11 : vector<2x128xf32>
    %13 = vector.extract_strided_slice %12 {offsets = [0, 0], sizes = [2, 32], strides = [1, 1]} : vector<2x128xf32> to vector<2x32xf32>
    %14 = arith.negf %13 : vector<2x32xf32>
    %15 = math.exp %14 : vector<2x32xf32>
    %cst_14 = arith.constant 1.000000e+00 : f32
    %16 = vector.broadcast %cst_14 : f32 to vector<2x32xf32>
    %17 = arith.addf %16, %15 : vector<2x32xf32>
    %18 = arith.divf %16, %17 : vector<2x32xf32>
    %19 = vector.extract_strided_slice %12 {offsets = [0, 32], sizes = [2, 32], strides = [1, 1]} : vector<2x128xf32> to vector<2x32xf32>
    %20 = arith.negf %19 : vector<2x32xf32>
    %21 = math.exp %20 : vector<2x32xf32>
    %cst_15 = arith.constant 1.000000e+00 : f32
    %22 = vector.broadcast %cst_15 : f32 to vector<2x32xf32>
    %23 = arith.addf %22, %21 : vector<2x32xf32>
    %24 = arith.divf %22, %23 : vector<2x32xf32>
    %25 = vector.extract_strided_slice %12 {offsets = [0, 64], sizes = [2, 32], strides = [1, 1]} : vector<2x128xf32> to vector<2x32xf32>
    %26 = math.tanh %25 : vector<2x32xf32>
    %27 = vector.extract_strided_slice %12 {offsets = [0, 96], sizes = [2, 32], strides = [1, 1]} : vector<2x128xf32> to vector<2x32xf32>
    %28 = arith.negf %27 : vector<2x32xf32>
    %29 = math.exp %28 : vector<2x32xf32>
    %cst_16 = arith.constant 1.000000e+00 : f32
    %30 = vector.broadcast %cst_16 : f32 to vector<2x32xf32>
    %31 = arith.addf %30, %29 : vector<2x32xf32>
    %32 = arith.divf %30, %31 : vector<2x32xf32>
    %33 = arith.mulf %24, %10 : vector<2x32xf32>
    %34 = arith.mulf %18, %26 : vector<2x32xf32>
    %35 = arith.addf %33, %34 : vector<2x32xf32>
    %36 = math.tanh %35 : vector<2x32xf32>
    %37 = arith.mulf %32, %36 : vector<2x32xf32>
    %cst_17 = arith.constant dense<0.000000e+00> : vector<2x8xf32>
    %38 = tpu.matmul %37, %4, %cst_17 {dimension_numbers = #tpu.dot_dimension_numbers<[1], [0], [0], [1], [0, 0, 1, 1], [], []>} : vector<2x32xf32>, vector<32x8xf32>, vector<2x8xf32> -> vector<2x8xf32>
    %39 = vector.broadcast %5 : vector<1x8xf32> to vector<2x8xf32>
    %40 = arith.addf %38, %39 : vector<2x8xf32>
    %41 = arith.index_cast %c0_i32 : i32 to index
    %c0_18 = arith.constant 0 : index
    %c0_19 = arith.constant 0 : index
    %42 = vector.load %arg7[%41, %c0_18, %c0_19] : memref<8x2x8xf32, #tpu.memory_space<vmem>>, vector<1x2x8xf32>
    %43 = vector.shape_cast %42 : vector<1x2x8xf32> to vector<2x8xf32>
    %44 = vector.shape_cast %40 : vector<2x8xf32> to vector<1x2x8xf32>
    tpu.vector_store %arg7[%41, %c0_18, %c0_19], %44 {strides = array<i32>} : memref<8x2x8xf32, #tpu.memory_space<vmem>>, vector<1x2x8xf32>,
    %c1_i32 = arith.constant 1 : i32
    %cst_20 = arith.constant dense<0.000000e+00> : vector<2x128xf32>
    %45 = tpu.matmul %37, %2, %cst_20 {dimension_numbers = #tpu.dot_dimension_numbers<[1], [0], [0], [1], [0, 0, 1, 1], [], []>} : vector<2x32xf32>, vector<32x128xf32>, vector<2x128xf32> -> vector<2x128xf32>
    %46 = arith.addf %8, %45 : vector<2x128xf32>
    %47 = vector.extract_strided_slice %46 {offsets = [0, 0], sizes = [2, 32], strides = [1, 1]} : vector<2x128xf32> to vector<2x32xf32>
    %48 = arith.negf %47 : vector<2x32xf32>
    %49 = math.exp %48 : vector<2x32xf32>
    %cst_21 = arith.constant 1.000000e+00 : f32
    %50 = vector.broadcast %cst_21 : f32 to vector<2x32xf32>
    %51 = arith.addf %50, %49 : vector<2x32xf32>
    %52 = arith.divf %50, %51 : vector<2x32xf32>
    %53 = vector.extract_strided_slice %46 {offsets = [0, 32], sizes = [2, 32], strides = [1, 1]} : vector<2x128xf32> to vector<2x32xf32>
    %54 = arith.negf %53 : vector<2x32xf32>
    %55 = math.exp %54 : vector<2x32xf32>
    %cst_22 = arith.constant 1.000000e+00 : f32
    %56 = vector.broadcast %cst_22 : f32 to vector<2x32xf32>
    %57 = arith.addf %56, %55 : vector<2x32xf32>
    %58 = arith.divf %56, %57 : vector<2x32xf32>
    %59 = vector.extract_strided_slice %46 {offsets = [0, 64], sizes = [2, 32], strides = [1, 1]} : vector<2x128xf32> to vector<2x32xf32>
    %60 = math.tanh %59 : vector<2x32xf32>
    %61 = vector.extract_strided_slice %46 {offsets = [0, 96], sizes = [2, 32], strides = [1, 1]} : vector<2x128xf32> to vector<2x32xf32>
    %62 = arith.negf %61 : vector<2x32xf32>
    %63 = math.exp %62 : vector<2x32xf32>
    %cst_23 = arith.constant 1.000000e+00 : f32
    %64 = vector.broadcast %cst_23 : f32 to vector<2x32xf32>
    %65 = arith.addf %64, %63 : vector<2x32xf32>
    %66 = arith.divf %64, %65 : vector<2x32xf32>
    %67 = arith.mulf %58, %35 : vector<2x32xf32>
    %68 = arith.mulf %52, %60 : vector<2x32xf32>
    %69 = arith.addf %67, %68 : vector<2x32xf32>
    %70 = math.tanh %69 : vector<2x32xf32>
    %71 = arith.mulf %66, %70 : vector<2x32xf32>
    %cst_24 = arith.constant dense<0.000000e+00> : vector<2x8xf32>
    %72 = tpu.matmul %71, %4, %cst_24 {dimension_numbers = #tpu.dot_dimension_numbers<[1], [0], [0], [1], [0, 0, 1, 1], [], []>} : vector<2x32xf32>, vector<32x8xf32>, vector<2x8xf32> -> vector<2x8xf32>
    %73 = vector.broadcast %5 : vector<1x8xf32> to vector<2x8xf32>
    %74 = arith.addf %72, %73 : vector<2x8xf32>
    %75 = arith.index_cast %c1_i32 : i32 to index
    %c0_25 = arith.constant 0 : index
    %c0_26 = arith.constant 0 : index
    %76 = vector.load %arg7[%75, %c0_25, %c0_26] : memref<8x2x8xf32, #tpu.memory_space<vmem>>, vector<1x2x8xf32>
    %77 = vector.shape_cast %76 : vector<1x2x8xf32> to vector<2x8xf32>
    %78 = vector.shape_cast %74 : vector<2x8xf32> to vector<1x2x8xf32>
    tpu.vector_store %arg7[%75, %c0_25, %c0_26], %78 {strides = array<i32>} : memref<8x2x8xf32, #tpu.memory_space<vmem>>, vector<1x2x8xf32>,
    %c2_i32 = arith.constant 2 : i32
    %cst_27 = arith.constant dense<0.000000e+00> : vector<2x128xf32>
    %79 = tpu.matmul %71, %2, %cst_27 {dimension_numbers = #tpu.dot_dimension_numbers<[1], [0], [0], [1], [0, 0, 1, 1], [], []>} : vector<2x32xf32>, vector<32x128xf32>, vector<2x128xf32> -> vector<2x128xf32>
    %80 = arith.addf %8, %79 : vector<2x128xf32>
    %81 = vector.extract_strided_slice %80 {offsets = [0, 0], sizes = [2, 32], strides = [1, 1]} : vector<2x128xf32> to vector<2x32xf32>
    %82 = arith.negf %81 : vector<2x32xf32>
    %83 = math.exp %82 : vector<2x32xf32>
    %cst_28 = arith.constant 1.000000e+00 : f32
    %84 = vector.broadcast %cst_28 : f32 to vector<2x32xf32>
    %85 = arith.addf %84, %83 : vector<2x32xf32>
    %86 = arith.divf %84, %85 : vector<2x32xf32>
    %87 = vector.extract_strided_slice %80 {offsets = [0, 32], sizes = [2, 32], strides = [1, 1]} : vector<2x128xf32> to vector<2x32xf32>
    %88 = arith.negf %87 : vector<2x32xf32>
    %89 = math.exp %88 : vector<2x32xf32>
    %cst_29 = arith.constant 1.000000e+00 : f32
    %90 = vector.broadcast %cst_29 : f32 to vector<2x32xf32>
    %91 = arith.addf %90, %89 : vector<2x32xf32>
    %92 = arith.divf %90, %91 : vector<2x32xf32>
    %93 = vector.extract_strided_slice %80 {offsets = [0, 64], sizes = [2, 32], strides = [1, 1]} : vector<2x128xf32> to vector<2x32xf32>
    %94 = math.tanh %93 : vector<2x32xf32>
    %95 = vector.extract_strided_slice %80 {offsets = [0, 96], sizes = [2, 32], strides = [1, 1]} : vector<2x128xf32> to vector<2x32xf32>
    %96 = arith.negf %95 : vector<2x32xf32>
    %97 = math.exp %96 : vector<2x32xf32>
    %cst_30 = arith.constant 1.000000e+00 : f32
    %98 = vector.broadcast %cst_30 : f32 to vector<2x32xf32>
    %99 = arith.addf %98, %97 : vector<2x32xf32>
    %100 = arith.divf %98, %99 : vector<2x32xf32>
    %101 = arith.mulf %92, %69 : vector<2x32xf32>
    %102 = arith.mulf %86, %94 : vector<2x32xf32>
    %103 = arith.addf %101, %102 : vector<2x32xf32>
    %104 = math.tanh %103 : vector<2x32xf32>
    %105 = arith.mulf %100, %104 : vector<2x32xf32>
    %cst_31 = arith.constant dense<0.000000e+00> : vector<2x8xf32>
    %106 = tpu.matmul %105, %4, %cst_31 {dimension_numbers = #tpu.dot_dimension_numbers<[1], [0], [0], [1], [0, 0, 1, 1], [], []>} : vector<2x32xf32>, vector<32x8xf32>, vector<2x8xf32> -> vector<2x8xf32>
    %107 = vector.broadcast %5 : vector<1x8xf32> to vector<2x8xf32>
    %108 = arith.addf %106, %107 : vector<2x8xf32>
    %109 = arith.index_cast %c2_i32 : i32 to index
    %c0_32 = arith.constant 0 : index
    %c0_33 = arith.constant 0 : index
    %110 = vector.load %arg7[%109, %c0_32, %c0_33] : memref<8x2x8xf32, #tpu.memory_space<vmem>>, vector<1x2x8xf32>
    %111 = vector.shape_cast %110 : vector<1x2x8xf32> to vector<2x8xf32>
    %112 = vector.shape_cast %108 : vector<2x8xf32> to vector<1x2x8xf32>
    tpu.vector_store %arg7[%109, %c0_32, %c0_33], %112 {strides = array<i32>} : memref<8x2x8xf32, #tpu.memory_space<vmem>>, vector<1x2x8xf32>,
    %c3_i32 = arith.constant 3 : i32
    %cst_34 = arith.constant dense<0.000000e+00> : vector<2x128xf32>
    %113 = tpu.matmul %105, %2, %cst_34 {dimension_numbers = #tpu.dot_dimension_numbers<[1], [0], [0], [1], [0, 0, 1, 1], [], []>} : vector<2x32xf32>, vector<32x128xf32>, vector<2x128xf32> -> vector<2x128xf32>
    %114 = arith.addf %8, %113 : vector<2x128xf32>
    %115 = vector.extract_strided_slice %114 {offsets = [0, 0], sizes = [2, 32], strides = [1, 1]} : vector<2x128xf32> to vector<2x32xf32>
    %116 = arith.negf %115 : vector<2x32xf32>
    %117 = math.exp %116 : vector<2x32xf32>
    %cst_35 = arith.constant 1.000000e+00 : f32
    %118 = vector.broadcast %cst_35 : f32 to vector<2x32xf32>
    %119 = arith.addf %118, %117 : vector<2x32xf32>
    %120 = arith.divf %118, %119 : vector<2x32xf32>
    %121 = vector.extract_strided_slice %114 {offsets = [0, 32], sizes = [2, 32], strides = [1, 1]} : vector<2x128xf32> to vector<2x32xf32>
    %122 = arith.negf %121 : vector<2x32xf32>
    %123 = math.exp %122 : vector<2x32xf32>
    %cst_36 = arith.constant 1.000000e+00 : f32
    %124 = vector.broadcast %cst_36 : f32 to vector<2x32xf32>
    %125 = arith.addf %124, %123 : vector<2x32xf32>
    %126 = arith.divf %124, %125 : vector<2x32xf32>
    %127 = vector.extract_strided_slice %114 {offsets = [0, 64], sizes = [2, 32], strides = [1, 1]} : vector<2x128xf32> to vector<2x32xf32>
    %128 = math.tanh %127 : vector<2x32xf32>
    %129 = vector.extract_strided_slice %114 {offsets = [0, 96], sizes = [2, 32], strides = [1, 1]} : vector<2x128xf32> to vector<2x32xf32>
    %130 = arith.negf %129 : vector<2x32xf32>
    %131 = math.exp %130 : vector<2x32xf32>
    %cst_37 = arith.constant 1.000000e+00 : f32
    %132 = vector.broadcast %cst_37 : f32 to vector<2x32xf32>
    %133 = arith.addf %132, %131 : vector<2x32xf32>
    %134 = arith.divf %132, %133 : vector<2x32xf32>
    %135 = arith.mulf %126, %103 : vector<2x32xf32>
    %136 = arith.mulf %120, %128 : vector<2x32xf32>
    %137 = arith.addf %135, %136 : vector<2x32xf32>
    %138 = math.tanh %137 : vector<2x32xf32>
    %139 = arith.mulf %134, %138 : vector<2x32xf32>
    %cst_38 = arith.constant dense<0.000000e+00> : vector<2x8xf32>
    %140 = tpu.matmul %139, %4, %cst_38 {dimension_numbers = #tpu.dot_dimension_numbers<[1], [0], [0], [1], [0, 0, 1, 1], [], []>} : vector<2x32xf32>, vector<32x8xf32>, vector<2x8xf32> -> vector<2x8xf32>
    %141 = vector.broadcast %5 : vector<1x8xf32> to vector<2x8xf32>
    %142 = arith.addf %140, %141 : vector<2x8xf32>
    %143 = arith.index_cast %c3_i32 : i32 to index
    %c0_39 = arith.constant 0 : index
    %c0_40 = arith.constant 0 : index
    %144 = vector.load %arg7[%143, %c0_39, %c0_40] : memref<8x2x8xf32, #tpu.memory_space<vmem>>, vector<1x2x8xf32>
    %145 = vector.shape_cast %144 : vector<1x2x8xf32> to vector<2x8xf32>
    %146 = vector.shape_cast %142 : vector<2x8xf32> to vector<1x2x8xf32>
    tpu.vector_store %arg7[%143, %c0_39, %c0_40], %146 {strides = array<i32>} : memref<8x2x8xf32, #tpu.memory_space<vmem>>, vector<1x2x8xf32>,
    %c4_i32 = arith.constant 4 : i32
    %cst_41 = arith.constant dense<0.000000e+00> : vector<2x128xf32>
    %147 = tpu.matmul %139, %2, %cst_41 {dimension_numbers = #tpu.dot_dimension_numbers<[1], [0], [0], [1], [0, 0, 1, 1], [], []>} : vector<2x32xf32>, vector<32x128xf32>, vector<2x128xf32> -> vector<2x128xf32>
    %148 = arith.addf %8, %147 : vector<2x128xf32>
    %149 = vector.extract_strided_slice %148 {offsets = [0, 0], sizes = [2, 32], strides = [1, 1]} : vector<2x128xf32> to vector<2x32xf32>
    %150 = arith.negf %149 : vector<2x32xf32>
    %151 = math.exp %150 : vector<2x32xf32>
    %cst_42 = arith.constant 1.000000e+00 : f32
    %152 = vector.broadcast %cst_42 : f32 to vector<2x32xf32>
    %153 = arith.addf %152, %151 : vector<2x32xf32>
    %154 = arith.divf %152, %153 : vector<2x32xf32>
    %155 = vector.extract_strided_slice %148 {offsets = [0, 32], sizes = [2, 32], strides = [1, 1]} : vector<2x128xf32> to vector<2x32xf32>
    %156 = arith.negf %155 : vector<2x32xf32>
    %157 = math.exp %156 : vector<2x32xf32>
    %cst_43 = arith.constant 1.000000e+00 : f32
    %158 = vector.broadcast %cst_43 : f32 to vector<2x32xf32>
    %159 = arith.addf %158, %157 : vector<2x32xf32>
    %160 = arith.divf %158, %159 : vector<2x32xf32>
    %161 = vector.extract_strided_slice %148 {offsets = [0, 64], sizes = [2, 32], strides = [1, 1]} : vector<2x128xf32> to vector<2x32xf32>
    %162 = math.tanh %161 : vector<2x32xf32>
    %163 = vector.extract_strided_slice %148 {offsets = [0, 96], sizes = [2, 32], strides = [1, 1]} : vector<2x128xf32> to vector<2x32xf32>
    %164 = arith.negf %163 : vector<2x32xf32>
    %165 = math.exp %164 : vector<2x32xf32>
    %cst_44 = arith.constant 1.000000e+00 : f32
    %166 = vector.broadcast %cst_44 : f32 to vector<2x32xf32>
    %167 = arith.addf %166, %165 : vector<2x32xf32>
    %168 = arith.divf %166, %167 : vector<2x32xf32>
    %169 = arith.mulf %160, %137 : vector<2x32xf32>
    %170 = arith.mulf %154, %162 : vector<2x32xf32>
    %171 = arith.addf %169, %170 : vector<2x32xf32>
    %172 = math.tanh %171 : vector<2x32xf32>
    %173 = arith.mulf %168, %172 : vector<2x32xf32>
    %cst_45 = arith.constant dense<0.000000e+00> : vector<2x8xf32>
    %174 = tpu.matmul %173, %4, %cst_45 {dimension_numbers = #tpu.dot_dimension_numbers<[1], [0], [0], [1], [0, 0, 1, 1], [], []>} : vector<2x32xf32>, vector<32x8xf32>, vector<2x8xf32> -> vector<2x8xf32>
    %175 = vector.broadcast %5 : vector<1x8xf32> to vector<2x8xf32>
    %176 = arith.addf %174, %175 : vector<2x8xf32>
    %177 = arith.index_cast %c4_i32 : i32 to index
    %c0_46 = arith.constant 0 : index
    %c0_47 = arith.constant 0 : index
    %178 = vector.load %arg7[%177, %c0_46, %c0_47] : memref<8x2x8xf32, #tpu.memory_space<vmem>>, vector<1x2x8xf32>
    %179 = vector.shape_cast %178 : vector<1x2x8xf32> to vector<2x8xf32>
    %180 = vector.shape_cast %176 : vector<2x8xf32> to vector<1x2x8xf32>
    tpu.vector_store %arg7[%177, %c0_46, %c0_47], %180 {strides = array<i32>} : memref<8x2x8xf32, #tpu.memory_space<vmem>>, vector<1x2x8xf32>,
    %c5_i32 = arith.constant 5 : i32
    %cst_48 = arith.constant dense<0.000000e+00> : vector<2x128xf32>
    %181 = tpu.matmul %173, %2, %cst_48 {dimension_numbers = #tpu.dot_dimension_numbers<[1], [0], [0], [1], [0, 0, 1, 1], [], []>} : vector<2x32xf32>, vector<32x128xf32>, vector<2x128xf32> -> vector<2x128xf32>
    %182 = arith.addf %8, %181 : vector<2x128xf32>
    %183 = vector.extract_strided_slice %182 {offsets = [0, 0], sizes = [2, 32], strides = [1, 1]} : vector<2x128xf32> to vector<2x32xf32>
    %184 = arith.negf %183 : vector<2x32xf32>
    %185 = math.exp %184 : vector<2x32xf32>
    %cst_49 = arith.constant 1.000000e+00 : f32
    %186 = vector.broadcast %cst_49 : f32 to vector<2x32xf32>
    %187 = arith.addf %186, %185 : vector<2x32xf32>
    %188 = arith.divf %186, %187 : vector<2x32xf32>
    %189 = vector.extract_strided_slice %182 {offsets = [0, 32], sizes = [2, 32], strides = [1, 1]} : vector<2x128xf32> to vector<2x32xf32>
    %190 = arith.negf %189 : vector<2x32xf32>
    %191 = math.exp %190 : vector<2x32xf32>
    %cst_50 = arith.constant 1.000000e+00 : f32
    %192 = vector.broadcast %cst_50 : f32 to vector<2x32xf32>
    %193 = arith.addf %192, %191 : vector<2x32xf32>
    %194 = arith.divf %192, %193 : vector<2x32xf32>
    %195 = vector.extract_strided_slice %182 {offsets = [0, 64], sizes = [2, 32], strides = [1, 1]} : vector<2x128xf32> to vector<2x32xf32>
    %196 = math.tanh %195 : vector<2x32xf32>
    %197 = vector.extract_strided_slice %182 {offsets = [0, 96], sizes = [2, 32], strides = [1, 1]} : vector<2x128xf32> to vector<2x32xf32>
    %198 = arith.negf %197 : vector<2x32xf32>
    %199 = math.exp %198 : vector<2x32xf32>
    %cst_51 = arith.constant 1.000000e+00 : f32
    %200 = vector.broadcast %cst_51 : f32 to vector<2x32xf32>
    %201 = arith.addf %200, %199 : vector<2x32xf32>
    %202 = arith.divf %200, %201 : vector<2x32xf32>
    %203 = arith.mulf %194, %171 : vector<2x32xf32>
    %204 = arith.mulf %188, %196 : vector<2x32xf32>
    %205 = arith.addf %203, %204 : vector<2x32xf32>
    %206 = math.tanh %205 : vector<2x32xf32>
    %207 = arith.mulf %202, %206 : vector<2x32xf32>
    %cst_52 = arith.constant dense<0.000000e+00> : vector<2x8xf32>
    %208 = tpu.matmul %207, %4, %cst_52 {dimension_numbers = #tpu.dot_dimension_numbers<[1], [0], [0], [1], [0, 0, 1, 1], [], []>} : vector<2x32xf32>, vector<32x8xf32>, vector<2x8xf32> -> vector<2x8xf32>
    %209 = vector.broadcast %5 : vector<1x8xf32> to vector<2x8xf32>
    %210 = arith.addf %208, %209 : vector<2x8xf32>
    %211 = arith.index_cast %c5_i32 : i32 to index
    %c0_53 = arith.constant 0 : index
    %c0_54 = arith.constant 0 : index
    %212 = vector.load %arg7[%211, %c0_53, %c0_54] : memref<8x2x8xf32, #tpu.memory_space<vmem>>, vector<1x2x8xf32>
    %213 = vector.shape_cast %212 : vector<1x2x8xf32> to vector<2x8xf32>
    %214 = vector.shape_cast %210 : vector<2x8xf32> to vector<1x2x8xf32>
    tpu.vector_store %arg7[%211, %c0_53, %c0_54], %214 {strides = array<i32>} : memref<8x2x8xf32, #tpu.memory_space<vmem>>, vector<1x2x8xf32>,
    %c6_i32 = arith.constant 6 : i32
    %cst_55 = arith.constant dense<0.000000e+00> : vector<2x128xf32>
    %215 = tpu.matmul %207, %2, %cst_55 {dimension_numbers = #tpu.dot_dimension_numbers<[1], [0], [0], [1], [0, 0, 1, 1], [], []>} : vector<2x32xf32>, vector<32x128xf32>, vector<2x128xf32> -> vector<2x128xf32>
    %216 = arith.addf %8, %215 : vector<2x128xf32>
    %217 = vector.extract_strided_slice %216 {offsets = [0, 0], sizes = [2, 32], strides = [1, 1]} : vector<2x128xf32> to vector<2x32xf32>
    %218 = arith.negf %217 : vector<2x32xf32>
    %219 = math.exp %218 : vector<2x32xf32>
    %cst_56 = arith.constant 1.000000e+00 : f32
    %220 = vector.broadcast %cst_56 : f32 to vector<2x32xf32>
    %221 = arith.addf %220, %219 : vector<2x32xf32>
    %222 = arith.divf %220, %221 : vector<2x32xf32>
    %223 = vector.extract_strided_slice %216 {offsets = [0, 32], sizes = [2, 32], strides = [1, 1]} : vector<2x128xf32> to vector<2x32xf32>
    %224 = arith.negf %223 : vector<2x32xf32>
    %225 = math.exp %224 : vector<2x32xf32>
    %cst_57 = arith.constant 1.000000e+00 : f32
    %226 = vector.broadcast %cst_57 : f32 to vector<2x32xf32>
    %227 = arith.addf %226, %225 : vector<2x32xf32>
    %228 = arith.divf %226, %227 : vector<2x32xf32>
    %229 = vector.extract_strided_slice %216 {offsets = [0, 64], sizes = [2, 32], strides = [1, 1]} : vector<2x128xf32> to vector<2x32xf32>
    %230 = math.tanh %229 : vector<2x32xf32>
    %231 = vector.extract_strided_slice %216 {offsets = [0, 96], sizes = [2, 32], strides = [1, 1]} : vector<2x128xf32> to vector<2x32xf32>
    %232 = arith.negf %231 : vector<2x32xf32>
    %233 = math.exp %232 : vector<2x32xf32>
    %cst_58 = arith.constant 1.000000e+00 : f32
    %234 = vector.broadcast %cst_58 : f32 to vector<2x32xf32>
    %235 = arith.addf %234, %233 : vector<2x32xf32>
    %236 = arith.divf %234, %235 : vector<2x32xf32>
    %237 = arith.mulf %228, %205 : vector<2x32xf32>
    %238 = arith.mulf %222, %230 : vector<2x32xf32>
    %239 = arith.addf %237, %238 : vector<2x32xf32>
    %240 = math.tanh %239 : vector<2x32xf32>
    %241 = arith.mulf %236, %240 : vector<2x32xf32>
    %cst_59 = arith.constant dense<0.000000e+00> : vector<2x8xf32>
    %242 = tpu.matmul %241, %4, %cst_59 {dimension_numbers = #tpu.dot_dimension_numbers<[1], [0], [0], [1], [0, 0, 1, 1], [], []>} : vector<2x32xf32>, vector<32x8xf32>, vector<2x8xf32> -> vector<2x8xf32>
    %243 = vector.broadcast %5 : vector<1x8xf32> to vector<2x8xf32>
    %244 = arith.addf %242, %243 : vector<2x8xf32>
    %245 = arith.index_cast %c6_i32 : i32 to index
    %c0_60 = arith.constant 0 : index
    %c0_61 = arith.constant 0 : index
    %246 = vector.load %arg7[%245, %c0_60, %c0_61] : memref<8x2x8xf32, #tpu.memory_space<vmem>>, vector<1x2x8xf32>
    %247 = vector.shape_cast %246 : vector<1x2x8xf32> to vector<2x8xf32>
    %248 = vector.shape_cast %244 : vector<2x8xf32> to vector<1x2x8xf32>
    tpu.vector_store %arg7[%245, %c0_60, %c0_61], %248 {strides = array<i32>} : memref<8x2x8xf32, #tpu.memory_space<vmem>>, vector<1x2x8xf32>,
    %c7_i32 = arith.constant 7 : i32
    %cst_62 = arith.constant dense<0.000000e+00> : vector<2x128xf32>
    %249 = tpu.matmul %241, %2, %cst_62 {dimension_numbers = #tpu.dot_dimension_numbers<[1], [0], [0], [1], [0, 0, 1, 1], [], []>} : vector<2x32xf32>, vector<32x128xf32>, vector<2x128xf32> -> vector<2x128xf32>
    %250 = arith.addf %8, %249 : vector<2x128xf32>
    %251 = vector.extract_strided_slice %250 {offsets = [0, 0], sizes = [2, 32], strides = [1, 1]} : vector<2x128xf32> to vector<2x32xf32>
    %252 = arith.negf %251 : vector<2x32xf32>
    %253 = math.exp %252 : vector<2x32xf32>
    %cst_63 = arith.constant 1.000000e+00 : f32
    %254 = vector.broadcast %cst_63 : f32 to vector<2x32xf32>
    %255 = arith.addf %254, %253 : vector<2x32xf32>
    %256 = arith.divf %254, %255 : vector<2x32xf32>
    %257 = vector.extract_strided_slice %250 {offsets = [0, 32], sizes = [2, 32], strides = [1, 1]} : vector<2x128xf32> to vector<2x32xf32>
    %258 = arith.negf %257 : vector<2x32xf32>
    %259 = math.exp %258 : vector<2x32xf32>
    %cst_64 = arith.constant 1.000000e+00 : f32
    %260 = vector.broadcast %cst_64 : f32 to vector<2x32xf32>
    %261 = arith.addf %260, %259 : vector<2x32xf32>
    %262 = arith.divf %260, %261 : vector<2x32xf32>
    %263 = vector.extract_strided_slice %250 {offsets = [0, 64], sizes = [2, 32], strides = [1, 1]} : vector<2x128xf32> to vector<2x32xf32>
    %264 = math.tanh %263 : vector<2x32xf32>
    %265 = vector.extract_strided_slice %250 {offsets = [0, 96], sizes = [2, 32], strides = [1, 1]} : vector<2x128xf32> to vector<2x32xf32>
    %266 = arith.negf %265 : vector<2x32xf32>
    %267 = math.exp %266 : vector<2x32xf32>
    %cst_65 = arith.constant 1.000000e+00 : f32
    %268 = vector.broadcast %cst_65 : f32 to vector<2x32xf32>
    %269 = arith.addf %268, %267 : vector<2x32xf32>
    %270 = arith.divf %268, %269 : vector<2x32xf32>
    %271 = arith.mulf %262, %239 : vector<2x32xf32>
    %272 = arith.mulf %256, %264 : vector<2x32xf32>
    %273 = arith.addf %271, %272 : vector<2x32xf32>
    %274 = math.tanh %273 : vector<2x32xf32>
    %275 = arith.mulf %270, %274 : vector<2x32xf32>
    %cst_66 = arith.constant dense<0.000000e+00> : vector<2x8xf32>
    %276 = tpu.matmul %275, %4, %cst_66 {dimension_numbers = #tpu.dot_dimension_numbers<[1], [0], [0], [1], [0, 0, 1, 1], [], []>} : vector<2x32xf32>, vector<32x8xf32>, vector<2x8xf32> -> vector<2x8xf32>
    %277 = vector.broadcast %5 : vector<1x8xf32> to vector<2x8xf32>
    %278 = arith.addf %276, %277 : vector<2x8xf32>
    %279 = arith.index_cast %c7_i32 : i32 to index
    %c0_67 = arith.constant 0 : index
    %c0_68 = arith.constant 0 : index
    %280 = vector.load %arg7[%279, %c0_67, %c0_68] : memref<8x2x8xf32, #tpu.memory_space<vmem>>, vector<1x2x8xf32>
    %281 = vector.shape_cast %280 : vector<1x2x8xf32> to vector<2x8xf32>
    %282 = vector.shape_cast %278 : vector<2x8xf32> to vector<1x2x8xf32>
    tpu.vector_store %arg7[%279, %c0_67, %c0_68], %282 {strides = array<i32>} : memref<8x2x8xf32, #tpu.memory_space<vmem>>, vector<1x2x8xf32>,
    %c8_i32 = arith.constant 8 : i32
    return
  }
  func.func @transform_0(%arg0: i32) -> (i32, i32) {
    %c0_i32 = arith.constant 0 : i32
    %c0_i32_0 = arith.constant 0 : i32
    return %arg0, %c0_i32 : i32, i32
  }
  func.func @transform_1(%arg0: i32) -> (i32, i32) {
    %c0_i32 = arith.constant 0 : i32
    %c0_i32_0 = arith.constant 0 : i32
    %c0_i32_1 = arith.constant 0 : i32
    return %c0_i32, %c0_i32_0 : i32, i32
  }
  func.func @transform_2(%arg0: i32) -> (i32, i32) {
    %c0_i32 = arith.constant 0 : i32
    %c0_i32_0 = arith.constant 0 : i32
    %c0_i32_1 = arith.constant 0 : i32
    return %c0_i32, %c0_i32_0 : i32, i32
  }
  func.func @transform_3(%arg0: i32) -> (i32, i32) {
    %c0_i32 = arith.constant 0 : i32
    %c0_i32_0 = arith.constant 0 : i32
    %c0_i32_1 = arith.constant 0 : i32
    return %c0_i32, %c0_i32_0 : i32, i32
  }
  func.func @transform_4(%arg0: i32) -> (i32, i32) {
    %c0_i32 = arith.constant 0 : i32
    %c0_i32_0 = arith.constant 0 : i32
    %c0_i32_1 = arith.constant 0 : i32
    return %c0_i32, %c0_i32_0 : i32, i32
  }
  func.func @transform_5(%arg0: i32) -> (i32, i32) {
    %c0_i32 = arith.constant 0 : i32
    %c0_i32_0 = arith.constant 0 : i32
    %c0_i32_1 = arith.constant 0 : i32
    return %c0_i32, %c0_i32_0 : i32, i32
  }
  func.func @transform_6(%arg0: i32) -> (i32, i32, i32) {
    %c0_i32 = arith.constant 0 : i32
    %c0_i32_0 = arith.constant 0 : i32
    %c0_i32_1 = arith.constant 0 : i32
    return %c0_i32, %arg0, %c0_i32_0 : i32, i32, i32
  }
}

</mosaic_0001>

<llo_original>
// kernel: tpu_custom_call.1
$region0: #{tpu_custom_call.1}
  #allocation0 [shape = 'u32[]', space=smem, size = 0x4, offset = 0x4, fixed_abs, tag = 'smem constant byte address 0x4 - core index']
  #allocation1 [shape = 'u32[72,128]{1,0:T(1,128)}', space=vmem, size = 0x9000, scoped, tag = 'internal scratch']
  %s0 = inlined_call_operand.hbm [shape: f32[2,8], index: 0, kind: input, shape index: {}]
  %s1 = inlined_call_operand.vmem [shape: f32[8,128], index: 1, kind: input, shape index: {}]
  %s2 = inlined_call_operand.vmem [shape: f32[32,128], index: 2, kind: input, shape index: {}]
  %s3 = inlined_call_operand.vmem [shape: f32[1,128], index: 3, kind: input, shape index: {}]
  %s4 = inlined_call_operand.vmem [shape: f32[32,8], index: 4, kind: input, shape index: {}]
  %s5 = inlined_call_operand.vmem [shape: f32[1,8], index: 5, kind: input, shape index: {}]
  %s6 = inlined_call_operand.hbm [shape: f32[8,2,8], index: 6, kind: output, shape index: {}]
  %s7 = sld [smem:[#allocation0]]
  $region38: #{tpu_custom_call.1} parent=0
    _
  %s9 = ssub.s32 1, %s7
  %s10 = scalar_select 0, %s9, %s7
  $region1: #{tpu_custom_call.1} parent=0
    #allocation2 [shape = 'u8[1024]{0}', space=vmem, size = 0x400, scoped, tag = 'input window, operand 0, single buffered']
    #allocation3 [shape = 's32[1]{0}', space=sflag, size = 0x4, scoped, tag = 'scoped memory for tpu_custom_call.1']
    #allocation4 [shape = 's32[1]{0}', space=sflag, size = 0x4, scoped, tag = 'scoped memory for tpu_custom_call.1']
    #allocation5 [shape = 'u8[8192]{0}', space=vmem, size = 0x2000, scoped, tag = 'output window, operand 0, single buffered']
    %11 = vsyncpa [#allocation3], 0
    %12 = vsyncpa [#allocation4], 0
    // Predicated region
    $region2: #{tpu_custom_call.1} parent=1 // pred_check
      _
    $region3: #{tpu_custom_call.1} parent=1 // pred_check_branch
      %14 = sbr.rel (0) target = $region5
    $region4: #{tpu_custom_call.1} parent=1 // pred_region
      %16 = vsyncadd [#allocation3], 0
      %s18 = sshll.u32 %s0, 4
      %s19 = int_to_ptr.hbm [resolvable:$true] %s18
      %s20 = sshll.u32 [#allocation2], 4
      %s21 = int_to_ptr.vmem [resolvable:$true] %s20
      %23 = dma.hbm_to_vmem [thread:$0]  %s19, 32, %s21, [#allocation3]
    $region5: #{tpu_custom_call.1} parent=1 // pred_fallthru
      _
    // Predicated region
    $region6: #{tpu_custom_call.1} parent=1 // pred_check
      _
    $region7: #{tpu_custom_call.1} parent=1 // pred_check_branch
      %25 = sbr.rel (0) target = $region9
    $region8: #{tpu_custom_call.1} parent=1 // pred_region
      _
    $region9: #{tpu_custom_call.1} parent=1 // pred_fallthru
      _
    // Predicated region
    $region10: #{tpu_custom_call.1} parent=1 // pred_check
      _
    $region11: #{tpu_custom_call.1} parent=1 // pred_check_branch
      %27 = sbr.rel (0) target = $region13
    $region12: #{tpu_custom_call.1} parent=1 // pred_region
      _
    $region13: #{tpu_custom_call.1} parent=1 // pred_fallthru
      _
    // Predicated region
    $region14: #{tpu_custom_call.1} parent=1 // pred_check
      _
    $region15: #{tpu_custom_call.1} parent=1 // pred_check_branch
      %29 = sbr.rel (0) target = $region17
    $region16: #{tpu_custom_call.1} parent=1 // pred_region
      _
    $region17: #{tpu_custom_call.1} parent=1 // pred_fallthru
      _
    // Predicated region
    $region18: #{tpu_custom_call.1} parent=1 // pred_check
      _
    $region19: #{tpu_custom_call.1} parent=1 // pred_check_branch
      %31 = sbr.rel (0) target = $region21
    $region20: #{tpu_custom_call.1} parent=1 // pred_region
      _
    $region21: #{tpu_custom_call.1} parent=1 // pred_fallthru
      _
    // Predicated region
    $region22: #{tpu_custom_call.1} parent=1 // pred_check
      _
    $region23: #{tpu_custom_call.1} parent=1 // pred_check_branch
      %33 = sbr.rel (0) target = $region25
    $region24: #{tpu_custom_call.1} parent=1 // pred_region
      _
    $region25: #{tpu_custom_call.1} parent=1 // pred_fallthru
      _
    // Predicated region
    $region26: #{tpu_custom_call.1} parent=1 // pred_check
      _
    $region27: #{tpu_custom_call.1} parent=1 // pred_check_branch
      %35 = sbr.rel (0) target = $region29
    $region28: #{tpu_custom_call.1} parent=1 // pred_region
      %37 = dma.done [#allocation3], 32
    $region29: #{tpu_custom_call.1} parent=1 // pred_fallthru
      _
    %v38 = vld [vmem:[#allocation2] sm:$0x3]
    %v39 = vld [vmem:[%s1] sm:$0xff]
    %v40 = vld [vmem:[%s2] sm:$0xff]
    %v41 = vld [vmem:[%s2 + $0x8] sm:$0xff]
    %v42 = vld [vmem:[%s2 + $0x10] sm:$0xff]
    %v43 = vld [vmem:[%s2 + $0x18] sm:$0xff]
    %v44 = vld [vmem:[%s3] sm:$0x1]
    %v45 = vld [vmem:[%s4] sm:$0xff]
    %v46 = vld [vmem:[%s4 + $0x8] sm:$0xff]
    %v47 = vld [vmem:[%s4 + $0x10] sm:$0xff]
    %v48 = vld [vmem:[%s4 + $0x18] sm:$0xff]
    %v49 = vld [vmem:[%s5] sm:$0x1]
    %v51 = vperm.slane %v44, 0
    %vm53 = vcmask 64512
    %v55 = vsel %vm53, %v38, 0
    %57 = vmatpush.msra.mxu0 0.0
    %58 = vmatpush.msra.mxu0 0.0
    %59 = vmatpush.msra.mxu0 0.0
    %60 = vmatpush.msra.mxu0 0.0
    %61 = vmatpush.msra.mxu0 0.0
    %62 = vmatpush.msra.mxu0 0.0
    %63 = vmatpush.msra.mxu0 0.0
    %64 = vmatpush.msra.mxu0 0.0
    %65 = vmatpush.msra.mxu0 0.0
    %66 = vmatpush.msra.mxu0 0.0
    %67 = vmatpush.msra.mxu0 0.0
    %68 = vmatpush.msra.mxu0 0.0
    %69 = vmatpush.msra.mxu0 0.0
    %70 = vmatpush.msra.mxu0 0.0
    %71 = vmatpush.msra.mxu0 0.0
    %72 = vmatpush.msra.mxu0 %v39
    %73 = vmatmul.f32.gmra.mxu0 %v55
    %v74 = vpop.f32.mrf.mxu0
    %v75 = vadd.f32 %v51, %v74
    %76 = vdwg.mxu0
    %vm77 = vcmask 261120
    %v79 = vsel %vm77, 0.0, 0
    %81 = vmatpush.msra.mxu0 0.0
    %82 = vmatpush.msra.mxu0 0.0
    %83 = vmatpush.msra.mxu0 0.0
    %84 = vmatpush.msra.mxu0 0.0
    %85 = vmatpush.msra.mxu0 0.0
    %86 = vmatpush.msra.mxu0 0.0
    %87 = vmatpush.msra.mxu0 0.0
    %88 = vmatpush.msra.mxu0 0.0
    %89 = vmatpush.msra.mxu0 0.0
    %90 = vmatpush.msra.mxu0 0.0
    %91 = vmatpush.msra.mxu0 0.0
    %92 = vmatpush.msra.mxu0 0.0
    %93 = vmatpush.msra.mxu0 %v43
    %94 = vmatpush.msra.mxu0 %v42
    %95 = vmatpush.msra.mxu0 %v41
    %96 = vmatpush.msra.mxu0 %v40
    %97 = vmatmul.f32.gmra.mxu0 %v79
    %v98 = vpop.f32.mrf.mxu0
    %v99 = vadd.f32 0.0, %v98
    %100 = vdwg.mxu0
    %v101 = vadd.f32 %v75, %v99
    %v102 = vxor.u32 %v101, 2147483648
    %v103 = vmul.f32 %v102, 1.442695
    %v104 = vpow.pop %v103
    %v105 = vadd.f32 %v104, 1.0
    %v106 = vrcp.pop %v105
    %v107 = vmul.f32 %v105, %v106
    %v108 = vsub.f32 1.0, %v107
    %v109 = vmul.f32 %v106, %v108
    %v110 = vadd.f32 %v106, %v109
    %vm111 = vweird.f32 %v105
    %vm112 = vweird.f32 %v106
    %vm113 = vmor %vm111, %vm112
    %v114 = vsel %vm113, %v106, %v110
    %v115 = vand.u32 2147483647, %v105
    %vm116 = vcmp.eq.f32.partialorder %v115, 8.507059e+37
    %v117 = vand.u32 %v105, 2147483648
    %v118 = vor.u32 1.1754944e-38, %v117
    %v119 = vsel %vm116, %v118, %v114
    %v120 = vmul.f32 1.0, %v119
    %v121 = vtanh.pop %v101
    %v122 = vmul.f32 %v120, 0.0
    %124 = vrot.lane.b32.xlu0 %v121, 64
    %v125 = vpop.permute.xlu0 %124
    %v127 = vmul.f32 %v120, %v125
    %129 = vrot.lane.b32.xlu0 %v127, 32
    %v130 = vpop.permute.xlu0 %129
    %v132 = vadd.f32 %v122, %v130
    %v133 = vtanh.pop %v132
    %135 = vrot.lane.b32.xlu0 %v133, 64
    %v136 = vpop.permute.xlu0 %135
    %v138 = vmul.f32 %v120, %v136
    %v140 = vperm.slane %v49, 0
    %143 = vrot.lane.b32.xlu0 %v138, 32
    %v144 = vpop.permute.xlu0 %143
    %v145 = vsel %vm77, %v144, 0
    %147 = vmatpush.msra.mxu0 0.0
    %148 = vmatpush.msra.mxu0 0.0
    %149 = vmatpush.msra.mxu0 0.0
    %150 = vmatpush.msra.mxu0 0.0
    %151 = vmatpush.msra.mxu0 0.0
    %152 = vmatpush.msra.mxu0 0.0
    %153 = vmatpush.msra.mxu0 0.0
    %154 = vmatpush.msra.mxu0 0.0
    %155 = vmatpush.msra.mxu0 0.0
    %156 = vmatpush.msra.mxu0 0.0
    %157 = vmatpush.msra.mxu0 0.0
    %158 = vmatpush.msra.mxu0 0.0
    %159 = vmatpush.msra.mxu0 %v48
    %160 = vmatpush.msra.mxu0 %v47
    %161 = vmatpush.msra.mxu0 %v46
    %162 = vmatpush.msra.mxu0 %v45
    %163 = vmatmul.f32.gmra.mxu0 %v145
    %v164 = vpop.f32.mrf.mxu0
    %v165 = vadd.f32 %v140, %v164
    %166 = vdwg.mxu0
    %vm167 = vcmask 58368
    %168 = vst.msk [vmem:[#allocation5] sm:$0x3] %vm167, %v165
    %169 = vmatpush.msra.mxu0 0.0
    %170 = vmatpush.msra.mxu0 0.0
    %171 = vmatpush.msra.mxu0 0.0
    %172 = vmatpush.msra.mxu0 0.0
    %173 = vmatpush.msra.mxu0 0.0
    %174 = vmatpush.msra.mxu0 0.0
    %175 = vmatpush.msra.mxu0 0.0
    %176 = vmatpush.msra.mxu0 0.0
    %177 = vmatpush.msra.mxu0 0.0
    %178 = vmatpush.msra.mxu0 0.0
    %179 = vmatpush.msra.mxu0 0.0
    %180 = vmatpush.msra.mxu0 0.0
    %181 = vmatpush.msra.mxu0 %v43
    %182 = vmatpush.msra.mxu0 %v42
    %183 = vmatpush.msra.mxu0 %v41
    %184 = vmatpush.msra.mxu0 %v40
    %185 = vmatmul.f32.gmra.mxu0 %v145
    %v186 = vpop.f32.mrf.mxu0
    %v187 = vadd.f32 0.0, %v186
    %188 = vdwg.mxu0
    %v189 = vadd.f32 %v75, %v187
    %v190 = vxor.u32 %v189, 2147483648
    %v191 = vmul.f32 %v190, 1.442695
    %v192 = vpow.pop %v191
    %v193 = vadd.f32 %v192, 1.0
    %v194 = vrcp.pop %v193
    %v195 = vmul.f32 %v193, %v194
    %v196 = vsub.f32 1.0, %v195
    %v197 = vmul.f32 %v194, %v196
    %v198 = vadd.f32 %v194, %v197
    %vm199 = vweird.f32 %v193
    %vm200 = vweird.f32 %v194
    %vm201 = vmor %vm199, %vm200
    %v202 = vsel %vm201, %v194, %v198
    %v203 = vand.u32 2147483647, %v193
    %vm204 = vcmp.eq.f32.partialorder %v203, 8.507059e+37
    %v205 = vand.u32 %v193, 2147483648
    %v206 = vor.u32 1.1754944e-38, %v205
    %v207 = vsel %vm204, %v206, %v202
    %v208 = vmul.f32 1.0, %v207
    %v209 = vtanh.pop %v189
    %v210 = vmul.f32 %v208, %v132
    %212 = vrot.lane.b32.xlu0 %v209, 64
    %v213 = vpop.permute.xlu0 %212
    %v215 = vmul.f32 %v208, %v213
    %217 = vrot.lane.b32.xlu0 %v215, 32
    %v218 = vpop.permute.xlu0 %217
    %v220 = vadd.f32 %v210, %v218
    %v221 = vtanh.pop %v220
    %223 = vrot.lane.b32.xlu0 %v221, 64
    %v224 = vpop.permute.xlu0 %223
    %v226 = vmul.f32 %v208, %v224
    %228 = vrot.lane.b32.xlu0 %v226, 32
    %v229 = vpop.permute.xlu0 %228
    %v230 = vsel %vm77, %v229, 0
    %232 = vmatpush.msra.mxu0 0.0
    %233 = vmatpush.msra.mxu0 0.0
    %234 = vmatpush.msra.mxu0 0.0
    %235 = vmatpush.msra.mxu0 0.0
    %236 = vmatpush.msra.mxu0 0.0
    %237 = vmatpush.msra.mxu0 0.0
    %238 = vmatpush.msra.mxu0 0.0
    %239 = vmatpush.msra.mxu0 0.0
    %240 = vmatpush.msra.mxu0 0.0
    %241 = vmatpush.msra.mxu0 0.0
    %242 = vmatpush.msra.mxu0 0.0
    %243 = vmatpush.msra.mxu0 0.0
    %244 = vmatpush.msra.mxu0 %v48
    %245 = vmatpush.msra.mxu0 %v47
    %246 = vmatpush.msra.mxu0 %v46
    %247 = vmatpush.msra.mxu0 %v45
    %248 = vmatmul.f32.gmra.mxu0 %v230
    %v249 = vpop.f32.mrf.mxu0
    %v250 = vadd.f32 %v140, %v249
    %251 = vdwg.mxu0
    %s252 = scalar_lea.vmem [#allocation5], 2
    %253 = vst.msk [vmem:[%s252] sm:$0x3] %vm167, %v250
    %254 = vmatpush.msra.mxu0 0.0
    %255 = vmatpush.msra.mxu0 0.0
    %256 = vmatpush.msra.mxu0 0.0
    %257 = vmatpush.msra.mxu0 0.0
    %258 = vmatpush.msra.mxu0 0.0
    %259 = vmatpush.msra.mxu0 0.0
    %260 = vmatpush.msra.mxu0 0.0
    %261 = vmatpush.msra.mxu0 0.0
    %262 = vmatpush.msra.mxu0 0.0
    %263 = vmatpush.msra.mxu0 0.0
    %264 = vmatpush.msra.mxu0 0.0
    %265 = vmatpush.msra.mxu0 0.0
    %266 = vmatpush.msra.mxu0 %v43
    %267 = vmatpush.msra.mxu0 %v42
    %268 = vmatpush.msra.mxu0 %v41
    %269 = vmatpush.msra.mxu0 %v40
    %270 = vmatmul.f32.gmra.mxu0 %v230
    %v271 = vpop.f32.mrf.mxu0
    %v272 = vadd.f32 0.0, %v271
    %273 = vdwg.mxu0
    %v274 = vadd.f32 %v75, %v272
    %v275 = vxor.u32 %v274, 2147483648
    %v276 = vmul.f32 %v275, 1.442695
    %v277 = vpow.pop %v276
    %v278 = vadd.f32 %v277, 1.0
    %v279 = vrcp.pop %v278
    %v280 = vmul.f32 %v278, %v279
    %v281 = vsub.f32 1.0, %v280
    %v282 = vmul.f32 %v279, %v281
    %v283 = vadd.f32 %v279, %v282
    %vm284 = vweird.f32 %v278
    %vm285 = vweird.f32 %v279
    %vm286 = vmor %vm284, %vm285
    %v287 = vsel %vm286, %v279, %v283
    %v288 = vand.u32 2147483647, %v278
    %vm289 = vcmp.eq.f32.partialorder %v288, 8.507059e+37
    %v290 = vand.u32 %v278, 2147483648
    %v291 = vor.u32 1.1754944e-38, %v290
    %v292 = vsel %vm289, %v291, %v287
    %v293 = vmul.f32 1.0, %v292
    %v294 = vtanh.pop %v274
    %v295 = vmul.f32 %v293, %v220
    %297 = vrot.lane.b32.xlu0 %v294, 64
    %v298 = vpop.permute.xlu0 %297
    %v300 = vmul.f32 %v293, %v298
    %302 = vrot.lane.b32.xlu0 %v300, 32
    %v303 = vpop.permute.xlu0 %302
    %v305 = vadd.f32 %v295, %v303
    %v306 = vtanh.pop %v305
    %308 = vrot.lane.b32.xlu0 %v306, 64
    %v309 = vpop.permute.xlu0 %308
    %v311 = vmul.f32 %v293, %v309
    %313 = vrot.lane.b32.xlu0 %v311, 32
    %v314 = vpop.permute.xlu0 %313
    %v315 = vsel %vm77, %v314, 0
    %317 = vmatpush.msra.mxu0 0.0
    %318 = vmatpush.msra.mxu0 0.0
    %319 = vmatpush.msra.mxu0 0.0
    %320 = vmatpush.msra.mxu0 0.0
    %321 = vmatpush.msra.mxu0 0.0
    %322 = vmatpush.msra.mxu0 0.0
    %323 = vmatpush.msra.mxu0 0.0
    %324 = vmatpush.msra.mxu0 0.0
    %325 = vmatpush.msra.mxu0 0.0
    %326 = vmatpush.msra.mxu0 0.0
    %327 = vmatpush.msra.mxu0 0.0
    %328 = vmatpush.msra.mxu0 0.0
    %329 = vmatpush.msra.mxu0 %v48
    %330 = vmatpush.msra.mxu0 %v47
    %331 = vmatpush.msra.mxu0 %v46
    %332 = vmatpush.msra.mxu0 %v45
    %333 = vmatmul.f32.gmra.mxu0 %v315
    %v334 = vpop.f32.mrf.mxu0
    %v335 = vadd.f32 %v140, %v334
    %336 = vdwg.mxu0
    %s337 = scalar_lea.vmem [#allocation5], 4
    %338 = vst.msk [vmem:[%s337] sm:$0x3] %vm167, %v335
    %339 = vmatpush.msra.mxu0 0.0
    %340 = vmatpush.msra.mxu0 0.0
    %341 = vmatpush.msra.mxu0 0.0
    %342 = vmatpush.msra.mxu0 0.0
    %343 = vmatpush.msra.mxu0 0.0
    %344 = vmatpush.msra.mxu0 0.0
    %345 = vmatpush.msra.mxu0 0.0
    %346 = vmatpush.msra.mxu0 0.0
    %347 = vmatpush.msra.mxu0 0.0
    %348 = vmatpush.msra.mxu0 0.0
    %349 = vmatpush.msra.mxu0 0.0
    %350 = vmatpush.msra.mxu0 0.0
    %351 = vmatpush.msra.mxu0 %v43
    %352 = vmatpush.msra.mxu0 %v42
    %353 = vmatpush.msra.mxu0 %v41
    %354 = vmatpush.msra.mxu0 %v40
    %355 = vmatmul.f32.gmra.mxu0 %v315
    %v356 = vpop.f32.mrf.mxu0
    %v357 = vadd.f32 0.0, %v356
    %358 = vdwg.mxu0
    %v359 = vadd.f32 %v75, %v357
    %v360 = vxor.u32 %v359, 2147483648
    %v361 = vmul.f32 %v360, 1.442695
    %v362 = vpow.pop %v361
    %v363 = vadd.f32 %v362, 1.0
    %v364 = vrcp.pop %v363
    %v365 = vmul.f32 %v363, %v364
    %v366 = vsub.f32 1.0, %v365
    %v367 = vmul.f32 %v364, %v366
    %v368 = vadd.f32 %v364, %v367
    %vm369 = vweird.f32 %v363
    %vm370 = vweird.f32 %v364
    %vm371 = vmor %vm369, %vm370
    %v372 = vsel %vm371, %v364, %v368
    %v373 = vand.u32 2147483647, %v363
    %vm374 = vcmp.eq.f32.partialorder %v373, 8.507059e+37
    %v375 = vand.u32 %v363, 2147483648
    %v376 = vor.u32 1.1754944e-38, %v375
    %v377 = vsel %vm374, %v376, %v372
    %v378 = vmul.f32 1.0, %v377
    %v379 = vtanh.pop %v359
    %v380 = vmul.f32 %v378, %v305
    %382 = vrot.lane.b32.xlu0 %v379, 64
    %v383 = vpop.permute.xlu0 %382
    %v385 = vmul.f32 %v378, %v383
    %387 = vrot.lane.b32.xlu0 %v385, 32
    %v388 = vpop.permute.xlu0 %387
    %v390 = vadd.f32 %v380, %v388
    %v391 = vtanh.pop %v390
    %393 = vrot.lane.b32.xlu0 %v391, 64
    %v394 = vpop.permute.xlu0 %393
    %v396 = vmul.f32 %v378, %v394
    %398 = vrot.lane.b32.xlu0 %v396, 32
    %v399 = vpop.permute.xlu0 %398
    %v400 = vsel %vm77, %v399, 0
    %402 = vmatpush.msra.mxu0 0.0
    %403 = vmatpush.msra.mxu0 0.0
    %404 = vmatpush.msra.mxu0 0.0
    %405 = vmatpush.msra.mxu0 0.0
    %406 = vmatpush.msra.mxu0 0.0
    %407 = vmatpush.msra.mxu0 0.0
    %408 = vmatpush.msra.mxu0 0.0
    %409 = vmatpush.msra.mxu0 0.0
    %410 = vmatpush.msra.mxu0 0.0
    %411 = vmatpush.msra.mxu0 0.0
    %412 = vmatpush.msra.mxu0 0.0
    %413 = vmatpush.msra.mxu0 0.0
    %414 = vmatpush.msra.mxu0 %v48
    %415 = vmatpush.msra.mxu0 %v47
    %416 = vmatpush.msra.mxu0 %v46
    %417 = vmatpush.msra.mxu0 %v45
    %418 = vmatmul.f32.gmra.mxu0 %v400
    %v419 = vpop.f32.mrf.mxu0
    %v420 = vadd.f32 %v140, %v419
    %421 = vdwg.mxu0
    %s422 = scalar_lea.vmem [#allocation5], 6
    %423 = vst.msk [vmem:[%s422] sm:$0x3] %vm167, %v420
    %424 = vmatpush.msra.mxu0 0.0
    %425 = vmatpush.msra.mxu0 0.0
    %426 = vmatpush.msra.mxu0 0.0
    %427 = vmatpush.msra.mxu0 0.0
    %428 = vmatpush.msra.mxu0 0.0
    %429 = vmatpush.msra.mxu0 0.0
    %430 = vmatpush.msra.mxu0 0.0
    %431 = vmatpush.msra.mxu0 0.0
    %432 = vmatpush.msra.mxu0 0.0
    %433 = vmatpush.msra.mxu0 0.0
    %434 = vmatpush.msra.mxu0 0.0
    %435 = vmatpush.msra.mxu0 0.0
    %436 = vmatpush.msra.mxu0 %v43
    %437 = vmatpush.msra.mxu0 %v42
    %438 = vmatpush.msra.mxu0 %v41
    %439 = vmatpush.msra.mxu0 %v40
    %440 = vmatmul.f32.gmra.mxu0 %v400
    %v441 = vpop.f32.mrf.mxu0
    %v442 = vadd.f32 0.0, %v441
    %443 = vdwg.mxu0
    %v444 = vadd.f32 %v75, %v442
    %v445 = vxor.u32 %v444, 2147483648
    %v446 = vmul.f32 %v445, 1.442695
    %v447 = vpow.pop %v446
    %v448 = vadd.f32 %v447, 1.0
    %v449 = vrcp.pop %v448
    %v450 = vmul.f32 %v448, %v449
    %v451 = vsub.f32 1.0, %v450
    %v452 = vmul.f32 %v449, %v451
    %v453 = vadd.f32 %v449, %v452
    %vm454 = vweird.f32 %v448
    %vm455 = vweird.f32 %v449
    %vm456 = vmor %vm454, %vm455
    %v457 = vsel %vm456, %v449, %v453
    %v458 = vand.u32 2147483647, %v448
    %vm459 = vcmp.eq.f32.partialorder %v458, 8.507059e+37
    %v460 = vand.u32 %v448, 2147483648
    %v461 = vor.u32 1.1754944e-38, %v460
    %v462 = vsel %vm459, %v461, %v457
    %v463 = vmul.f32 1.0, %v462
    %v464 = vtanh.pop %v444
    %v465 = vmul.f32 %v463, %v390
    %467 = vrot.lane.b32.xlu0 %v464, 64
    %v468 = vpop.permute.xlu0 %467
    %v470 = vmul.f32 %v463, %v468
    %472 = vrot.lane.b32.xlu0 %v470, 32
    %v473 = vpop.permute.xlu0 %472
    %v475 = vadd.f32 %v465, %v473
    %v476 = vtanh.pop %v475
    %478 = vrot.lane.b32.xlu0 %v476, 64
    %v479 = vpop.permute.xlu0 %478
    %v481 = vmul.f32 %v463, %v479
    %483 = vrot.lane.b32.xlu0 %v481, 32
    %v484 = vpop.permute.xlu0 %483
    %v485 = vsel %vm77, %v484, 0
    %487 = vmatpush.msra.mxu0 0.0
    %488 = vmatpush.msra.mxu0 0.0
    %489 = vmatpush.msra.mxu0 0.0
    %490 = vmatpush.msra.mxu0 0.0
    %491 = vmatpush.msra.mxu0 0.0
    %492 = vmatpush.msra.mxu0 0.0
    %493 = vmatpush.msra.mxu0 0.0
    %494 = vmatpush.msra.mxu0 0.0
    %495 = vmatpush.msra.mxu0 0.0
    %496 = vmatpush.msra.mxu0 0.0
    %497 = vmatpush.msra.mxu0 0.0
    %498 = vmatpush.msra.mxu0 0.0
    %499 = vmatpush.msra.mxu0 %v48
    %500 = vmatpush.msra.mxu0 %v47
    %501 = vmatpush.msra.mxu0 %v46
    %502 = vmatpush.msra.mxu0 %v45
    %503 = vmatmul.f32.gmra.mxu0 %v485
    %v504 = vpop.f32.mrf.mxu0
    %v505 = vadd.f32 %v140, %v504
    %506 = vdwg.mxu0
    %s507 = scalar_lea.vmem [#allocation5], 8
    %508 = vst.msk [vmem:[%s507] sm:$0x3] %vm167, %v505
    %509 = vmatpush.msra.mxu0 0.0
    %510 = vmatpush.msra.mxu0 0.0
    %511 = vmatpush.msra.mxu0 0.0
    %512 = vmatpush.msra.mxu0 0.0
    %513 = vmatpush.msra.mxu0 0.0
    %514 = vmatpush.msra.mxu0 0.0
    %515 = vmatpush.msra.mxu0 0.0
    %516 = vmatpush.msra.mxu0 0.0
    %517 = vmatpush.msra.mxu0 0.0
    %518 = vmatpush.msra.mxu0 0.0
    %519 = vmatpush.msra.mxu0 0.0
    %520 = vmatpush.msra.mxu0 0.0
    %521 = vmatpush.msra.mxu0 %v43
    %522 = vmatpush.msra.mxu0 %v42
    %523 = vmatpush.msra.mxu0 %v41
    %524 = vmatpush.msra.mxu0 %v40
    %525 = vmatmul.f32.gmra.mxu0 %v485
    %v526 = vpop.f32.mrf.mxu0
    %v527 = vadd.f32 0.0, %v526
    %528 = vdwg.mxu0
    %v529 = vadd.f32 %v75, %v527
    %v530 = vxor.u32 %v529, 2147483648
    %v531 = vmul.f32 %v530, 1.442695
    %v532 = vpow.pop %v531
    %v533 = vadd.f32 %v532, 1.0
    %v534 = vrcp.pop %v533
    %v535 = vmul.f32 %v533, %v534
    %v536 = vsub.f32 1.0, %v535
    %v537 = vmul.f32 %v534, %v536
    %v538 = vadd.f32 %v534, %v537
    %vm539 = vweird.f32 %v533
    %vm540 = vweird.f32 %v534
    %vm541 = vmor %vm539, %vm540
    %v542 = vsel %vm541, %v534, %v538
    %v543 = vand.u32 2147483647, %v533
    %vm544 = vcmp.eq.f32.partialorder %v543, 8.507059e+37
    %v545 = vand.u32 %v533, 2147483648
    %v546 = vor.u32 1.1754944e-38, %v545
    %v547 = vsel %vm544, %v546, %v542
    %v548 = vmul.f32 1.0, %v547
    %v549 = vtanh.pop %v529
    %v550 = vmul.f32 %v548, %v475
    %552 = vrot.lane.b32.xlu0 %v549, 64
    %v553 = vpop.permute.xlu0 %552
    %v555 = vmul.f32 %v548, %v553
    %557 = vrot.lane.b32.xlu0 %v555, 32
    %v558 = vpop.permute.xlu0 %557
    %v560 = vadd.f32 %v550, %v558
    %v561 = vtanh.pop %v560
    %563 = vrot.lane.b32.xlu0 %v561, 64
    %v564 = vpop.permute.xlu0 %563
    %v566 = vmul.f32 %v548, %v564
    %568 = vrot.lane.b32.xlu0 %v566, 32
    %v569 = vpop.permute.xlu0 %568
    %v570 = vsel %vm77, %v569, 0
    %572 = vmatpush.msra.mxu0 0.0
    %573 = vmatpush.msra.mxu0 0.0
    %574 = vmatpush.msra.mxu0 0.0
    %575 = vmatpush.msra.mxu0 0.0
    %576 = vmatpush.msra.mxu0 0.0
    %577 = vmatpush.msra.mxu0 0.0
    %578 = vmatpush.msra.mxu0 0.0
    %579 = vmatpush.msra.mxu0 0.0
    %580 = vmatpush.msra.mxu0 0.0
    %581 = vmatpush.msra.mxu0 0.0
    %582 = vmatpush.msra.mxu0 0.0
    %583 = vmatpush.msra.mxu0 0.0
    %584 = vmatpush.msra.mxu0 %v48
    %585 = vmatpush.msra.mxu0 %v47
    %586 = vmatpush.msra.mxu0 %v46
    %587 = vmatpush.msra.mxu0 %v45
    %588 = vmatmul.f32.gmra.mxu0 %v570
    %v589 = vpop.f32.mrf.mxu0
    %v590 = vadd.f32 %v140, %v589
    %591 = vdwg.mxu0
    %s592 = scalar_lea.vmem [#allocation5], 10
    %593 = vst.msk [vmem:[%s592] sm:$0x3] %vm167, %v590
    %594 = vmatpush.msra.mxu0 0.0
    %595 = vmatpush.msra.mxu0 0.0
    %596 = vmatpush.msra.mxu0 0.0
    %597 = vmatpush.msra.mxu0 0.0
    %598 = vmatpush.msra.mxu0 0.0
    %599 = vmatpush.msra.mxu0 0.0
    %600 = vmatpush.msra.mxu0 0.0
    %601 = vmatpush.msra.mxu0 0.0
    %602 = vmatpush.msra.mxu0 0.0
    %603 = vmatpush.msra.mxu0 0.0
    %604 = vmatpush.msra.mxu0 0.0
    %605 = vmatpush.msra.mxu0 0.0
    %606 = vmatpush.msra.mxu0 %v43
    %607 = vmatpush.msra.mxu0 %v42
    %608 = vmatpush.msra.mxu0 %v41
    %609 = vmatpush.msra.mxu0 %v40
    %610 = vmatmul.f32.gmra.mxu0 %v570
    %v611 = vpop.f32.mrf.mxu0
    %v612 = vadd.f32 0.0, %v611
    %613 = vdwg.mxu0
    %v614 = vadd.f32 %v75, %v612
    %v615 = vxor.u32 %v614, 2147483648
    %v616 = vmul.f32 %v615, 1.442695
    %v617 = vpow.pop %v616
    %v618 = vadd.f32 %v617, 1.0
    %v619 = vrcp.pop %v618
    %v620 = vmul.f32 %v618, %v619
    %v621 = vsub.f32 1.0, %v620
    %v622 = vmul.f32 %v619, %v621
    %v623 = vadd.f32 %v619, %v622
    %vm624 = vweird.f32 %v618
    %vm625 = vweird.f32 %v619
    %vm626 = vmor %vm624, %vm625
    %v627 = vsel %vm626, %v619, %v623
    %v628 = vand.u32 2147483647, %v618
    %vm629 = vcmp.eq.f32.partialorder %v628, 8.507059e+37
    %v630 = vand.u32 %v618, 2147483648
    %v631 = vor.u32 1.1754944e-38, %v630
    %v632 = vsel %vm629, %v631, %v627
    %v633 = vmul.f32 1.0, %v632
    %v634 = vtanh.pop %v614
    %v635 = vmul.f32 %v633, %v560
    %637 = vrot.lane.b32.xlu0 %v634, 64
    %v638 = vpop.permute.xlu0 %637
    %v640 = vmul.f32 %v633, %v638
    %642 = vrot.lane.b32.xlu0 %v640, 32
    %v643 = vpop.permute.xlu0 %642
    %v645 = vadd.f32 %v635, %v643
    %v646 = vtanh.pop %v645
    %648 = vrot.lane.b32.xlu0 %v646, 64
    %v649 = vpop.permute.xlu0 %648
    %v651 = vmul.f32 %v633, %v649
    %653 = vrot.lane.b32.xlu0 %v651, 32
    %v654 = vpop.permute.xlu0 %653
    %v655 = vsel %vm77, %v654, 0
    %657 = vmatpush.msra.mxu0 0.0
    %658 = vmatpush.msra.mxu0 0.0
    %659 = vmatpush.msra.mxu0 0.0
    %660 = vmatpush.msra.mxu0 0.0
    %661 = vmatpush.msra.mxu0 0.0
    %662 = vmatpush.msra.mxu0 0.0
    %663 = vmatpush.msra.mxu0 0.0
    %664 = vmatpush.msra.mxu0 0.0
    %665 = vmatpush.msra.mxu0 0.0
    %666 = vmatpush.msra.mxu0 0.0
    %667 = vmatpush.msra.mxu0 0.0
    %668 = vmatpush.msra.mxu0 0.0
    %669 = vmatpush.msra.mxu0 %v48
    %670 = vmatpush.msra.mxu0 %v47
    %671 = vmatpush.msra.mxu0 %v46
    %672 = vmatpush.msra.mxu0 %v45
    %673 = vmatmul.f32.gmra.mxu0 %v655
    %v674 = vpop.f32.mrf.mxu0
    %v675 = vadd.f32 %v140, %v674
    %676 = vdwg.mxu0
    %s677 = scalar_lea.vmem [#allocation5], 12
    %678 = vst.msk [vmem:[%s677] sm:$0x3] %vm167, %v675
    %679 = vmatpush.msra.mxu0 0.0
    %680 = vmatpush.msra.mxu0 0.0
    %681 = vmatpush.msra.mxu0 0.0
    %682 = vmatpush.msra.mxu0 0.0
    %683 = vmatpush.msra.mxu0 0.0
    %684 = vmatpush.msra.mxu0 0.0
    %685 = vmatpush.msra.mxu0 0.0
    %686 = vmatpush.msra.mxu0 0.0
    %687 = vmatpush.msra.mxu0 0.0
    %688 = vmatpush.msra.mxu0 0.0
    %689 = vmatpush.msra.mxu0 0.0
    %690 = vmatpush.msra.mxu0 0.0
    %691 = vmatpush.msra.mxu0 %v43
    %692 = vmatpush.msra.mxu0 %v42
    %693 = vmatpush.msra.mxu0 %v41
    %694 = vmatpush.msra.mxu0 %v40
    %695 = vmatmul.f32.gmra.mxu0 %v655
    %v696 = vpop.f32.mrf.mxu0
    %v697 = vadd.f32 0.0, %v696
    %698 = vdwg.mxu0
    %v699 = vadd.f32 %v75, %v697
    %v700 = vxor.u32 %v699, 2147483648
    %v701 = vmul.f32 %v700, 1.442695
    %v702 = vpow.pop %v701
    %v703 = vadd.f32 %v702, 1.0
    %v704 = vrcp.pop %v703
    %v705 = vmul.f32 %v703, %v704
    %v706 = vsub.f32 1.0, %v705
    %v707 = vmul.f32 %v704, %v706
    %v708 = vadd.f32 %v704, %v707
    %vm709 = vweird.f32 %v703
    %vm710 = vweird.f32 %v704
    %vm711 = vmor %vm709, %vm710
    %v712 = vsel %vm711, %v704, %v708
    %v713 = vand.u32 2147483647, %v703
    %vm714 = vcmp.eq.f32.partialorder %v713, 8.507059e+37
    %v715 = vand.u32 %v703, 2147483648
    %v716 = vor.u32 1.1754944e-38, %v715
    %v717 = vsel %vm714, %v716, %v712
    %v718 = vmul.f32 1.0, %v717
    %v719 = vtanh.pop %v699
    %v720 = vmul.f32 %v718, %v645
    %722 = vrot.lane.b32.xlu0 %v719, 64
    %v723 = vpop.permute.xlu0 %722
    %v725 = vmul.f32 %v718, %v723
    %727 = vrot.lane.b32.xlu0 %v725, 32
    %v728 = vpop.permute.xlu0 %727
    %v730 = vadd.f32 %v720, %v728
    %v731 = vtanh.pop %v730
    %733 = vrot.lane.b32.xlu0 %v731, 64
    %v734 = vpop.permute.xlu0 %733
    %v736 = vmul.f32 %v718, %v734
    %738 = vrot.lane.b32.xlu0 %v736, 32
    %v739 = vpop.permute.xlu0 %738
    %v740 = vsel %vm77, %v739, 0
    %742 = vmatpush.msra.mxu0 0.0
    %743 = vmatpush.msra.mxu0 0.0
    %744 = vmatpush.msra.mxu0 0.0
    %745 = vmatpush.msra.mxu0 0.0
    %746 = vmatpush.msra.mxu0 0.0
    %747 = vmatpush.msra.mxu0 0.0
    %748 = vmatpush.msra.mxu0 0.0
    %749 = vmatpush.msra.mxu0 0.0
    %750 = vmatpush.msra.mxu0 0.0
    %751 = vmatpush.msra.mxu0 0.0
    %752 = vmatpush.msra.mxu0 0.0
    %753 = vmatpush.msra.mxu0 0.0
    %754 = vmatpush.msra.mxu0 %v48
    %755 = vmatpush.msra.mxu0 %v47
    %756 = vmatpush.msra.mxu0 %v46
    %757 = vmatpush.msra.mxu0 %v45
    %758 = vmatmul.f32.gmra.mxu0 %v740
    %v759 = vpop.f32.mrf.mxu0
    %v760 = vadd.f32 %v140, %v759
    %761 = vdwg.mxu0
    %s762 = scalar_lea.vmem [#allocation5], 14
    %763 = vst.msk [vmem:[%s762] sm:$0x3] %vm167, %v760
    // Predicated region
    $region30: #{tpu_custom_call.1} parent=1 // pred_check
      _
    $region31: #{tpu_custom_call.1} parent=1 // pred_check_branch
      %765 = sbr.rel (0) target = $region33
    $region32: #{tpu_custom_call.1} parent=1 // pred_region
      %767 = vsyncadd [#allocation4], 0
      %s768 = sshll.u32 [#allocation5], 4
      %s769 = int_to_ptr.vmem [resolvable:$true] %s768
      %s770 = sshll.u32 %s6, 4
      %s771 = int_to_ptr.hbm [resolvable:$true] %s770
      %776 = dma.vmem_to_hbm [thread:$0]  %s769, 256, %s771, [#allocation4], 32, 32, 2
    $region33: #{tpu_custom_call.1} parent=1 // pred_fallthru
      _
    // Predicated region
    $region34: #{tpu_custom_call.1} parent=1 // pred_check
      _
    $region35: #{tpu_custom_call.1} parent=1 // pred_check_branch
      %778 = sbr.rel (0) target = $region37
    $region36: #{tpu_custom_call.1} parent=1 // pred_region
      %780 = dma.done [#allocation4], 256
    $region37: #{tpu_custom_call.1} parent=1 // pred_fallthru
      _
    %781 = vsyncpa [#allocation3], 1
    %782 = vsyncpa [#allocation4], 1

</llo_original>
